<compile_context>
chip_gen: v7x
topology: tpu7x:2x2x1
jax: 0.10.0
libtpu: 0.0.40
codegen_flags: <defaults>
</compile_context>

<pallas_src>
import functools

import jax
import jax.numpy as jnp
from jax.experimental import pallas as pl
from jax.experimental.pallas import tpu as pltpu

EMBEDDING_DIM = 50
LANE = 128          # hidden dim padded to one full lane tile
SLOT_ALIGN = 64     # each h/r/t K-slab padded to 64 rows -> fused K = 192
TILE_B_MAX = 2048   # double-buffered f32 inputs + temps << 16 MiB (v5e scoped default)


def _round_up(x, m):
    return (x + m - 1) // m * m


def _cdiv(a, b):
    return -(-a // b)


def scoring_kernel(h_ref, r_ref, t_ref, w1_ref, b1_ref, w2_ref, b2_ref, o_ref):
    """One batch tile of the fused scorer.

    h/r/t: (TILE_B, E) activations      w1: (K=3*SLOT, H) fused packed W1^T
    b1/w2: (1, H) f32 rows              b2: (1,) f32 scalar in SMEM
    o    : (1, TILE_B) f32 lane-dense score slab
    """
    E = h_ref.shape[-1]
    K = w1_ref.shape[0]
    slot = K // 3
    rows = h_ref.shape[0]
    cdt = w1_ref.dtype

    # Assemble the fused LHS [h | 0 | r | 0 | t | 0] as a value; the zero pad
    # lanes line up with zero rows of w1, so the math equals cat([h,r,t]) @ W1^T.
    pieces = []
    zpad = jnp.zeros((rows, slot - E), cdt) if slot > E else None
    for ref in (h_ref, r_ref, t_ref):
        pieces.append(ref[...].astype(cdt))
        if zpad is not None:
            pieces.append(zpad)
    x = jnp.concatenate(pieces, axis=-1)                      # (TILE_B, K)

    # Single K=192 MXU matmul, f32 accumulation.
    acc = jnp.dot(x, w1_ref[...], preferred_element_type=jnp.float32)
    h1 = jnp.maximum(acc + b1_ref[...], 0.0)                  # f32 bias + ReLU

    # Second Linear (H -> 1): VPU multiply + cross-lane reduce against the
    # lane-dense (1, H) w2 row (padded lanes are zero).  If the sublane->lane
    # relayout of `scores` ever becomes the binding slot (most likely on v5e),
    # switch to lax.dot_general(w2, h1, contracting the last dims) and keep
    # whichever measures faster.
    scores = jnp.sum(h1 * w2_ref[...], axis=-1) + b2_ref[0]   # (TILE_B,)
    o_ref[...] = scores.reshape(1, -1).astype(o_ref.dtype)


def prepare_params(w1, b1, w2, b2, *, compute_dtype=jnp.bfloat16):
    """One-time transform of nn.Linear params into kernel-ready layout.

    w1: (E, 3E)  b1: (E,)  w2: (1, E)  b2: (1,)
    Returns (w1f, b1p, w2p, b2p):
      w1f: (3*SLOT, H) fused W1^T — slab s (h/r/t) at rows [s*SLOT, s*SLOT+E),
           zero elsewhere; hidden dim zero-padded to H = 128 lanes.
      b1p, w2p: (1, H) f32 (epilogue stays f32).  b2p: (1,) f32 SMEM scalar.
    """
    E, k_in = w1.shape
    assert k_in == 3 * E, "W1 must be (E, 3E)"
    H = _round_up(E, LANE)
    slot = _round_up(E, SLOT_ALIGN)
    K = 3 * slot

    w1t = jnp.asarray(w1, jnp.float32).T                       # (3E, E)
    w1f = jnp.zeros((K, H), jnp.float32)
    for s in range(3):
        w1f = w1f.at[s * slot:s * slot + E, :E].set(w1t[s * E:(s + 1) * E])
    w1f = w1f.astype(compute_dtype)

    pad = ((0, 0), (0, H - E))
    b1p = jnp.pad(jnp.asarray(b1, jnp.float32).reshape(1, E), pad)   # (1, H)
    w2p = jnp.pad(jnp.asarray(w2, jnp.float32).reshape(1, E), pad)   # (1, H)
    b2p = jnp.asarray(b2, jnp.float32).reshape(1,)                   # (1,) SMEM
    return (w1f, b1p, w2p, b2p)


@functools.partial(jax.jit, static_argnames=("tile_b_max",))
def scoring_forward(h, r, t, params, *, tile_b_max=TILE_B_MAX):
    """Pallas path.  h, r, t: (B, E) (f32 or bf16, no wrapper copies made).
    params: output of prepare_params.  Returns (B, 1) f32 scores."""
    w1f, b1p, w2p, b2p = params
    B, E = h.shape
    K, H = w1f.shape

    # Balanced tiling: never more than ~8 rows of batch padding per tile, and
    # keep >= 2 parallel grid steps for large batches (v7x has 2 TensorCores).
    num_tiles = _cdiv(B, tile_b_max)
    if num_tiles == 1 and B >= 1024:
        num_tiles = 2
    if num_tiles > 1:
        tile_b = _round_up(_cdiv(B, num_tiles), 128)   # lane-aligned out blocks
    else:
        tile_b = _round_up(B, 8)
    b_pad = num_tiles * tile_b                         # only the tiny output is padded

    act_spec = pl.BlockSpec((tile_b, E), lambda i: (i, 0))
    out = pl.pallas_call(
        scoring_kernel,
        out_shape=jax.ShapeDtypeStruct((1, b_pad), jnp.float32),
        grid=(num_tiles,),
        in_specs=[
            act_spec, act_spec, act_spec,                    # h, r, t tiles
            pl.BlockSpec((K, H), lambda i: (0, 0)),          # fused W1 (VMEM-resident)
            pl.BlockSpec((1, H), lambda i: (0, 0)),          # b1 row
            pl.BlockSpec((1, H), lambda i: (0, 0)),          # w2 row
            pl.BlockSpec(memory_space=pltpu.MemorySpace.SMEM),  # b2 scalar
        ],
        out_specs=pl.BlockSpec((1, tile_b), lambda i: (0, i)),
        compiler_params=pltpu.CompilerParams(
            dimension_semantics=("parallel",)),
    )(h, r, t, w1f, b1p, w2p, b2p)

    return out[0, :B].reshape(B, 1)


def scoring_forward_xla(h, r, t, params):
    """Plain-XLA path using the same packed params — preferable for tiny
    batches (B ~ 8) where a pallas_call launch exceeds the whole computation."""
    w1f, b1p, w2p, b2p = params
    E = h.shape[1]
    slot = w1f.shape[0] // 3
    f32 = jnp.float32
    acc = (h.astype(f32) @ w1f[0:E].astype(f32)
           + r.astype(f32) @ w1f[slot:slot + E].astype(f32)
           + t.astype(f32) @ w1f[2 * slot:2 * slot + E].astype(f32))
    h1 = jnp.maximum(acc + b1p, 0.0)
    return jnp.sum(h1 * w2p, axis=-1, keepdims=True) + b2p


def score_triples(h, r, t, params, *, min_pallas_batch=512):
    """Dispatch: Pallas only pays off at thousands of rows per call."""
    if h.shape[0] < min_pallas_batch:
        return scoring_forward_xla(h, r, t, params)
    return scoring_forward(h, r, t, params)


def reference_forward(h, r, t, w1, b1, w2, b2):
    x = jnp.concatenate([h, r, t], axis=1)
    x = jnp.maximum(x @ w1.T + b1, 0.0)
    return x @ w2.T + b2


def init_params(key, embedding_dim):
    """Deterministic init matching nn.Linear shapes: W1 (E, 3E), b1 (E,), W2 (1, E), b2 (1,)."""
    k1, k2, k3, k4 = jax.random.split(key, 4)
    lim1 = 1.0 / jnp.sqrt(embedding_dim * 3)
    lim2 = 1.0 / jnp.sqrt(embedding_dim)
    w1 = jax.random.uniform(k1, (embedding_dim, embedding_dim * 3),
                            minval=-lim1, maxval=lim1, dtype=jnp.float32)
    b1 = jax.random.uniform(k2, (embedding_dim,),
                            minval=-lim1, maxval=lim1, dtype=jnp.float32)
    w2 = jax.random.uniform(k3, (1, embedding_dim),
                            minval=-lim2, maxval=lim2, dtype=jnp.float32)
    b2 = jax.random.uniform(k4, (1,),
                            minval=-lim2, maxval=lim2, dtype=jnp.float32)
    return w1, b1, w2, b2


if __name__ == "__main__":
    key = jax.random.PRNGKey(0)
    kh, kr, kt, kp = jax.random.split(key, 4)
    E = EMBEDDING_DIM
    w1, b1, w2, b2 = init_params(kp, E)

    # --- Small-shape check (B=8), f32 operands for a tight comparison. ---
    B = 8
    h = jax.random.normal(kh, (B, E), dtype=jnp.float32)
    r = jax.random.normal(kr, (B, E), dtype=jnp.float32)
    t = jax.random.normal(kt, (B, E), dtype=jnp.float32)
    ref = reference_forward(h, r, t, w1, b1, w2, b2)

    params_f32 = prepare_params(w1, b1, w2, b2, compute_dtype=jnp.float32)
    out = jax.block_until_ready(scoring_forward(h, r, t, params_f32))
    assert out.shape == (B, 1)
    assert jnp.allclose(out, ref, atol=1e-4, rtol=1e-4), "f32 mismatch vs reference"

    # --- Multi-tile grid + partial last block (B=300, tile_b_max=128), f32. ---
    B2 = 300
    kh2, kr2, kt2 = jax.random.split(jax.random.PRNGKey(1), 3)
    h2 = jax.random.normal(kh2, (B2, E), dtype=jnp.float32)
    r2 = jax.random.normal(kr2, (B2, E), dtype=jnp.float32)
    t2 = jax.random.normal(kt2, (B2, E), dtype=jnp.float32)
    ref2 = reference_forward(h2, r2, t2, w1, b1, w2, b2)
    out2 = jax.block_until_ready(
        scoring_forward(h2, r2, t2, params_f32, tile_b_max=128))
    assert out2.shape == (B2, 1)
    assert jnp.allclose(out2, ref2, atol=1e-4, rtol=1e-4), "multi-tile mismatch"

    # --- bf16 operands (producer-side cast), f32 accumulation + epilogue. ---
    params_bf16 = prepare_params(w1, b1, w2, b2)          # default bf16
    h2b, r2b, t2b = (a.astype(jnp.bfloat16) for a in (h2, r2, t2))
    out_bf16 = jax.block_until_ready(
        scoring_forward(h2b, r2b, t2b, params_bf16, tile_b_max=128))
    assert out_bf16.shape == (B2, 1)
    assert jnp.allclose(out_bf16, ref2, atol=1e-1, rtol=1e-1), "bf16 mismatch"

    print("KERNEL_OK")
</pallas_src>

<mosaic_0001>
module attributes {stable_mosaic.version = 11 : i64} {
  func.func @scoring_kernel(%arg0: i32, %arg1: memref<8x50xf32, #tpu.memory_space<vmem>>, %arg2: memref<8x50xf32, #tpu.memory_space<vmem>>, %arg3: memref<8x50xf32, #tpu.memory_space<vmem>>, %arg4: memref<192x128xf32, #tpu.memory_space<vmem>>, %arg5: memref<1x128xf32, #tpu.memory_space<vmem>>, %arg6: memref<1x128xf32, #tpu.memory_space<vmem>>, %arg7: memref<1xf32, #tpu.memory_space<smem>>, %arg8: memref<1x8xf32, #tpu.memory_space<vmem>>) attributes {dimension_semantics = [#tpu.dimension_semantics<parallel>], iteration_bounds = array<i64: 1>, scalar_prefetch = 0 : i64, scratch_operands = 0 : i64, tpu.core_type = #tpu.core_type<tc>, window_params = [{transform_indices = @transform_0, window_bounds = array<i64: 8, 50>}, {transform_indices = @transform_1, window_bounds = array<i64: 8, 50>}, {transform_indices = @transform_2, window_bounds = array<i64: 8, 50>}, {pipeline_mode = #tpu.pipeline_mode<synchronous>, transform_indices = @transform_3, window_bounds = array<i64: 192, 128>}, {pipeline_mode = #tpu.pipeline_mode<synchronous>, transform_indices = @transform_4, window_bounds = array<i64: 1, 128>}, {pipeline_mode = #tpu.pipeline_mode<synchronous>, transform_indices = @transform_5, window_bounds = array<i64: 1, 128>}, {transform_indices = @transform_6, window_bounds = array<i64: 1>}, {transform_indices = @transform_7, window_bounds = array<i64: 1, 8>}]} {
    %cst = arith.constant 0.000000e+00 : f32
    %0 = vector.broadcast %cst : f32 to vector<8x14xf32>
    %c0 = arith.constant 0 : index
    %c0_0 = arith.constant 0 : index
    %1 = vector.load %arg1[%c0, %c0_0] : memref<8x50xf32, #tpu.memory_space<vmem>>, vector<8x50xf32>
    %c0_1 = arith.constant 0 : index
    %c0_2 = arith.constant 0 : index
    %2 = vector.load %arg2[%c0_1, %c0_2] : memref<8x50xf32, #tpu.memory_space<vmem>>, vector<8x50xf32>
    %c0_3 = arith.constant 0 : index
    %c0_4 = arith.constant 0 : index
    %3 = vector.load %arg3[%c0_3, %c0_4] : memref<8x50xf32, #tpu.memory_space<vmem>>, vector<8x50xf32>
    %4 = tpu.concatenate %1, %0, %2, %0, %3, %0 in 1 : vector<8x50xf32>, vector<8x14xf32>, vector<8x50xf32>, vector<8x14xf32>, vector<8x50xf32>, vector<8x14xf32> -> vector<8x192xf32>
    %c0_5 = arith.constant 0 : index
    %c0_6 = arith.constant 0 : index
    %5 = vector.load %arg4[%c0_5, %c0_6] : memref<192x128xf32, #tpu.memory_space<vmem>>, vector<192x128xf32>
    %cst_7 = arith.constant dense<0.000000e+00> : vector<8x128xf32>
    %6 = tpu.matmul %4, %5, %cst_7 {dimension_numbers = #tpu.dot_dimension_numbers<[1], [0], [0], [1], [0, 0, 1, 1], [], []>} : vector<8x192xf32>, vector<192x128xf32>, vector<8x128xf32> -> vector<8x128xf32>
    %c0_8 = arith.constant 0 : index
    %c0_9 = arith.constant 0 : index
    %7 = vector.load %arg5[%c0_8, %c0_9] : memref<1x128xf32, #tpu.memory_space<vmem>>, vector<1x128xf32>
    %8 = vector.broadcast %7 : vector<1x128xf32> to vector<8x128xf32>
    %9 = arith.addf %6, %8 : vector<8x128xf32>
    %cst_10 = arith.constant 0.000000e+00 : f32
    %10 = vector.broadcast %cst_10 : f32 to vector<8x128xf32>
    %11 = arith.maximumf %9, %10 : vector<8x128xf32>
    %c0_11 = arith.constant 0 : index
    %c0_12 = arith.constant 0 : index
    %12 = vector.load %arg6[%c0_11, %c0_12] : memref<1x128xf32, #tpu.memory_space<vmem>>, vector<1x128xf32>
    %13 = vector.broadcast %12 : vector<1x128xf32> to vector<8x128xf32>
    %14 = arith.mulf %11, %13 : vector<8x128xf32>
    %cst_13 = arith.constant dense<0.000000e+00> : vector<8xf32>
    %15 = vector.multi_reduction <add>, %14, %cst_13 [1] : vector<8x128xf32> to vector<8xf32>
    %c0_14 = arith.constant 0 : index
    %16 = memref.load %arg7[%c0_14] : memref<1xf32, #tpu.memory_space<smem>>
    %17 = vector.broadcast %16 : f32 to vector<8xf32>
    %18 = arith.addf %15, %17 : vector<8xf32>
    %19 = vector.shape_cast %18 : vector<8xf32> to vector<1x8xf32>
    %c0_15 = arith.constant 0 : index
    %c0_16 = arith.constant 0 : index
    %20 = vector.load %arg8[%c0_15, %c0_16] : memref<1x8xf32, #tpu.memory_space<vmem>>, vector<1x8xf32>
    tpu.vector_store %arg8[%c0_15, %c0_16], %19 {strides = array<i32>} : memref<1x8xf32, #tpu.memory_space<vmem>>, vector<1x8xf32>,
    return
  }
  func.func @transform_0(%arg0: i32) -> (i32, i32) {
    %c0_i32 = arith.constant 0 : i32
    %c0_i32_0 = arith.constant 0 : i32
    return %arg0, %c0_i32 : i32, i32
  }
  func.func @transform_1(%arg0: i32) -> (i32, i32) {
    %c0_i32 = arith.constant 0 : i32
    %c0_i32_0 = arith.constant 0 : i32
    return %arg0, %c0_i32 : i32, i32
  }
  func.func @transform_2(%arg0: i32) -> (i32, i32) {
    %c0_i32 = arith.constant 0 : i32
    %c0_i32_0 = arith.constant 0 : i32
    return %arg0, %c0_i32 : i32, i32
  }
  func.func @transform_3(%arg0: i32) -> (i32, i32) {
    %c0_i32 = arith.constant 0 : i32
    %c0_i32_0 = arith.constant 0 : i32
    %c0_i32_1 = arith.constant 0 : i32
    return %c0_i32, %c0_i32_0 : i32, i32
  }
  func.func @transform_4(%arg0: i32) -> (i32, i32) {
    %c0_i32 = arith.constant 0 : i32
    %c0_i32_0 = arith.constant 0 : i32
    %c0_i32_1 = arith.constant 0 : i32
    return %c0_i32, %c0_i32_0 : i32, i32
  }
  func.func @transform_5(%arg0: i32) -> (i32, i32) {
    %c0_i32 = arith.constant 0 : i32
    %c0_i32_0 = arith.constant 0 : i32
    %c0_i32_1 = arith.constant 0 : i32
    return %c0_i32, %c0_i32_0 : i32, i32
  }
  func.func @transform_6(%arg0: i32) -> i32 {
    %c0_i32 = arith.constant 0 : i32
    %c0_i32_0 = arith.constant 0 : i32
    return %c0_i32 : i32
  }
  func.func @transform_7(%arg0: i32) -> (i32, i32) {
    %c0_i32 = arith.constant 0 : i32
    %c0_i32_0 = arith.constant 0 : i32
    return %c0_i32, %arg0 : i32, i32
  }
}

</mosaic_0001>

<llo_original>
// kernel: scoring_forward.1
$region0: #{scoring_forward.1}
  #allocation0 [shape = 'u32[]', space=smem, size = 0x4, offset = 0x4, fixed_abs, tag = 'smem constant byte address 0x4 - core index']
  #allocation1 [shape = 'u32[144,128]{1,0:T(1,128)}', space=vmem, size = 0x12000, scoped, tag = 'internal scratch']
  #allocation2 [shape = 'f32[1]{0:T(128)S(6)}', space=smem, size = 0x200, scoped, tag = 'scoped memory for scoring_forward.1']
  %s0 = inlined_call_operand.hbm [shape: f32[8,50], index: 0, kind: input, shape index: {}]
  %s1 = inlined_call_operand.hbm [shape: f32[8,50], index: 1, kind: input, shape index: {}]
  %s2 = inlined_call_operand.vmem [shape: f32[8,50], index: 2, kind: input, shape index: {}]
  %s3 = inlined_call_operand.hbm [shape: f32[192,128], index: 3, kind: input, shape index: {}]
  %s4 = inlined_call_operand.vmem [shape: f32[1,128], index: 4, kind: input, shape index: {}]
  %s5 = inlined_call_operand.vmem [shape: f32[1,128], index: 5, kind: input, shape index: {}]
  %s6 = inlined_call_operand.<no memory space> [shape: f32[1], index: 6, kind: input, shape index: {}]
  %s7 = inlined_call_operand.hbm [shape: f32[1,8], index: 7, kind: output, shape index: {}]
  %s8 = sld [smem:[#allocation0]]
  $region50: #{scoring_forward.1} parent=0
    _
  %s10 = ssub.s32 1, %s8
  %s11 = scalar_select 0, %s10, %s8
  %12 = sst [smem:[#allocation2]] %s6
  $region1: #{scoring_forward.1} parent=0
    #allocation3 [shape = 'u8[4096]{0}', space=vmem, size = 0x1000, scoped, tag = 'input window, operand 0, single buffered']
    #allocation4 [shape = 's32[1]{0}', space=sflag, size = 0x4, scoped, tag = 'scoped memory for scoring_forward.1']
    #allocation5 [shape = 's32[1]{0}', space=sflag, size = 0x4, scoped, tag = 'scoped memory for scoring_forward.1']
    #allocation6 [shape = 'u8[4096]{0}', space=vmem, size = 0x1000, scoped, tag = 'input window, operand 1, single buffered']
    #allocation7 [shape = 's32[1]{0}', space=sflag, size = 0x4, scoped, tag = 'scoped memory for scoring_forward.1']
    #allocation8 [shape = 'u8[98304]{0}', space=vmem, size = 0x18000, scoped, tag = 'input window, operand 3, single buffered']
    #allocation9 [shape = 'u8[512]{0}', space=vmem, size = 0x400, scoped, tag = 'output window, operand 0, single buffered']
    %13 = vsyncpa [#allocation4], 0
    %14 = vsyncpa [#allocation7], 0
    %15 = vsyncpa [#allocation5], 0
    // Predicated region
    $region2: #{scoring_forward.1} parent=1 // pred_check
      _
    $region3: #{scoring_forward.1} parent=1 // pred_check_branch
      %17 = sbr.rel (0) target = $region5
    $region4: #{scoring_forward.1} parent=1 // pred_region
      %s19 = ssub.s32 128, 128
      %20 = vsyncadd [#allocation4], %s19
      %s22 = sshll.u32 [#allocation3], 4
      %s23 = int_to_ptr.vmem [resolvable:$true] %s22
      %25 = dma.hbm_to_vmem [thread:$0]  %s0, 128, %s23, [#allocation4]
    $region5: #{scoring_forward.1} parent=1 // pred_fallthru
      _
    // Predicated region
    $region6: #{scoring_forward.1} parent=1 // pred_check
      _
    $region7: #{scoring_forward.1} parent=1 // pred_check_branch
      %27 = sbr.rel (0) target = $region9
    $region8: #{scoring_forward.1} parent=1 // pred_region
      %s29 = ssub.s32 128, 128
      %30 = vsyncadd [#allocation7], %s29
      %s32 = sshll.u32 [#allocation6], 4
      %s33 = int_to_ptr.vmem [resolvable:$true] %s32
      %35 = dma.hbm_to_vmem [thread:$0]  %s1, 128, %s33, [#allocation7]
    $region9: #{scoring_forward.1} parent=1 // pred_fallthru
      _
    // Predicated region
    $region10: #{scoring_forward.1} parent=1 // pred_check
      _
    $region11: #{scoring_forward.1} parent=1 // pred_check_branch
      %37 = sbr.rel (0) target = $region13
    $region12: #{scoring_forward.1} parent=1 // pred_region
      _
    $region13: #{scoring_forward.1} parent=1 // pred_fallthru
      _
    // Predicated region
    $region14: #{scoring_forward.1} parent=1 // pred_check
      _
    $region15: #{scoring_forward.1} parent=1 // pred_check_branch
      %39 = sbr.rel (0) target = $region17
    $region16: #{scoring_forward.1} parent=1 // pred_region
      %s41 = ssub.s32 3072, 3072
      %42 = vsyncadd [#allocation7], %s41
      %s43 = sshll.u32 [#allocation8], 4
      %s44 = int_to_ptr.vmem [resolvable:$true] %s43
      %49 = dma.hbm_to_vmem [thread:$0]  %s3, 3072, %s44, [#allocation7], 128, 128, 8
    $region17: #{scoring_forward.1} parent=1 // pred_fallthru
      _
    // Predicated region
    $region18: #{scoring_forward.1} parent=1 // pred_check
      _
    $region19: #{scoring_forward.1} parent=1 // pred_check_branch
      %51 = sbr.rel (0) target = $region21
    $region20: #{scoring_forward.1} parent=1 // pred_region
      _
    $region21: #{scoring_forward.1} parent=1 // pred_fallthru
      _
    // Predicated region
    $region22: #{scoring_forward.1} parent=1 // pred_check
      _
    $region23: #{scoring_forward.1} parent=1 // pred_check_branch
      %53 = sbr.rel (0) target = $region25
    $region24: #{scoring_forward.1} parent=1 // pred_region
      _
    $region25: #{scoring_forward.1} parent=1 // pred_fallthru
      _
    // Predicated region
    $region26: #{scoring_forward.1} parent=1 // pred_check
      _
    $region27: #{scoring_forward.1} parent=1 // pred_check_branch
      %55 = sbr.rel (0) target = $region29
    $region28: #{scoring_forward.1} parent=1 // pred_region
      _
    $region29: #{scoring_forward.1} parent=1 // pred_fallthru
      _
    // Predicated region
    $region30: #{scoring_forward.1} parent=1 // pred_check
      _
    $region31: #{scoring_forward.1} parent=1 // pred_check_branch
      %57 = sbr.rel (0) target = $region33
    $region32: #{scoring_forward.1} parent=1 // pred_region
      %58 = dma.done [#allocation4], 128
    $region33: #{scoring_forward.1} parent=1 // pred_fallthru
      _
    // Predicated region
    $region34: #{scoring_forward.1} parent=1 // pred_check
      _
    $region35: #{scoring_forward.1} parent=1 // pred_check_branch
      %60 = sbr.rel (0) target = $region37
    $region36: #{scoring_forward.1} parent=1 // pred_region
      %61 = dma.done [#allocation7], 128
    $region37: #{scoring_forward.1} parent=1 // pred_fallthru
      _
    // Predicated region
    $region38: #{scoring_forward.1} parent=1 // pred_check
      _
    $region39: #{scoring_forward.1} parent=1 // pred_check_branch
      %63 = sbr.rel (0) target = $region41
    $region40: #{scoring_forward.1} parent=1 // pred_region
      %64 = dma.done [#allocation7], 3072
    $region41: #{scoring_forward.1} parent=1 // pred_fallthru
      _
    %v65 = vld [vmem:[#allocation3] sm:$0xff]
    %v66 = vld [vmem:[#allocation6] sm:$0xff]
    %v67 = vld [vmem:[%s2] sm:$0xff]
    %69 = vrot.lane.b32.xlu0 %v66, 64
    %v70 = vpop.permute.xlu0 %69
    %vm72 = vcmask 408576
    %v73 = vsel %vm72, %v65, 0.0
    %vm74 = vcmask 523264
    %v75 = vsel %vm74, %v73, %v70
    %vm76 = vcmask 932864
    %v77 = vsel %vm76, %v75, 0.0
    %v78 = vsel %vm72, %v67, 0.0
    %v79 = vld [vmem:[#allocation8] sm:$0xff]
    %v80 = vld [vmem:[#allocation8 + $0x8] sm:$0xff]
    %v81 = vld [vmem:[#allocation8 + $0x10] sm:$0xff]
    %v82 = vld [vmem:[#allocation8 + $0x18] sm:$0xff]
    %v83 = vld [vmem:[#allocation8 + $0x20] sm:$0xff]
    %v84 = vld [vmem:[#allocation8 + $0x28] sm:$0xff]
    %v85 = vld [vmem:[#allocation8 + $0x30] sm:$0xff]
    %v86 = vld [vmem:[#allocation8 + $0x38] sm:$0xff]
    %v87 = vld [vmem:[#allocation8 + $0x40] sm:$0xff]
    %v88 = vld [vmem:[#allocation8 + $0x48] sm:$0xff]
    %v89 = vld [vmem:[#allocation8 + $0x50] sm:$0xff]
    %v90 = vld [vmem:[#allocation8 + $0x58] sm:$0xff]
    %v91 = vld [vmem:[#allocation8 + $0x60] sm:$0xff]
    %v92 = vld [vmem:[#allocation8 + $0x68] sm:$0xff]
    %v93 = vld [vmem:[#allocation8 + $0x70] sm:$0xff]
    %v94 = vld [vmem:[#allocation8 + $0x78] sm:$0xff]
    %v95 = vld [vmem:[#allocation8 + $0x80] sm:$0xff]
    %v96 = vld [vmem:[#allocation8 + $0x88] sm:$0xff]
    %v97 = vld [vmem:[#allocation8 + $0x90] sm:$0xff]
    %v98 = vld [vmem:[#allocation8 + $0x98] sm:$0xff]
    %v99 = vld [vmem:[#allocation8 + $0xa0] sm:$0xff]
    %v100 = vld [vmem:[#allocation8 + $0xa8] sm:$0xff]
    %v101 = vld [vmem:[#allocation8 + $0xb0] sm:$0xff]
    %v102 = vld [vmem:[#allocation8 + $0xb8] sm:$0xff]
    %v103 = vld [vmem:[%s4] sm:$0x1]
    %v105 = vlaneseq
    %v106 = vshrl.u32 %v105, 7
    %v107 = vsub.s32 0, %v106
    %v108 = vrot.slane %v103, %v107
    %v111 = vsel %vm74, %v78, 0
    %113 = vmatprep.subr.mxu0 0.0
    %114 = vmatpush1.msra.mxu0 %v79
    %115 = vmatprep.subr.mxu0 0.0
    %116 = vmatpush1.msra.mxu0 %v80
    %117 = vmatprep.subr.mxu0 0.0
    %118 = vmatpush1.msra.mxu0 %v81
    %119 = vmatprep.subr.mxu0 0.0
    %120 = vmatpush1.msra.mxu0 %v82
    %121 = vmatprep.subr.mxu0 0.0
    %122 = vmatpush1.msra.mxu0 %v83
    %123 = vmatprep.subr.mxu0 0.0
    %124 = vmatpush1.msra.mxu0 %v84
    %125 = vmatprep.subr.mxu0 0.0
    %126 = vmatpush1.msra.mxu0 %v85
    %127 = vmatprep.subr.mxu0 0.0
    %128 = vmatpush1.msra.mxu0 %v86
    %129 = vmatprep.subr.mxu0 0.0
    %130 = vmatpush1.msra.mxu0 %v87
    %131 = vmatprep.subr.mxu0 0.0
    %132 = vmatpush1.msra.mxu0 %v88
    %133 = vmatprep.subr.mxu0 0.0
    %134 = vmatpush1.msra.mxu0 %v89
    %135 = vmatprep.subr.mxu0 0.0
    %136 = vmatpush1.msra.mxu0 %v90
    %137 = vmatprep.subr.mxu0 0.0
    %138 = vmatpush1.msra.mxu0 %v91
    %139 = vmatprep.subr.mxu0 0.0
    %140 = vmatpush1.msra.mxu0 %v92
    %141 = vmatprep.subr.mxu0 0.0
    %142 = vmatpush1.msra.mxu0 %v93
    %143 = vmatprep.subr.mxu0 0.0
    %144 = vmatpush1.msra.mxu0 %v94
    %145 = vmatprep.subr.mxu0 0.0
    %146 = vmatpush1.msra.mxu0 %v95
    %147 = vmatprep.subr.mxu0 0.0
    %148 = vmatpush1.msra.mxu0 %v96
    %149 = vmatprep.subr.mxu0 0.0
    %150 = vmatpush1.msra.mxu0 %v97
    %151 = vmatprep.subr.mxu0 0.0
    %152 = vmatpush1.msra.mxu0 %v98
    %153 = vmatprep.subr.mxu0 0.0
    %154 = vmatpush1.msra.mxu0 %v99
    %155 = vmatprep.subr.mxu0 0.0
    %156 = vmatpush1.msra.mxu0 %v100
    %157 = vmatprep.subr.mxu0 0.0
    %158 = vmatpush1.msra.mxu0 %v101
    %159 = vmatprep.subr.mxu0 0.0
    %160 = vmatpush1.msra.mxu0 %v102
    %161 = vmatprep.subr.mxu0 0.0
    %162 = vmatpush1.msra.mxu0 0.0
    %163 = vmatprep.subr.mxu0 0.0
    %164 = vmatpush1.msra.mxu0 0.0
    %165 = vmatprep.subr.mxu0 0.0
    %166 = vmatpush1.msra.mxu0 0.0
    %167 = vmatprep.subr.mxu0 0.0
    %168 = vmatpush1.msra.mxu0 0.0
    %169 = vmatprep.subr.mxu0 0.0
    %170 = vmatpush1.msra.mxu0 0.0
    %171 = vmatprep.subr.mxu0 0.0
    %172 = vmatpush1.msra.mxu0 0.0
    %173 = vmatprep.subr.mxu0 0.0
    %174 = vmatpush1.msra.mxu0 0.0
    %175 = vmatprep.subr.mxu0 0.0
    %176 = vmatpush1.msra.mxu0 0.0
    %177 = vmatprep.mubr.f32.mxu0 %v111
    %178 = vmatmul.mubr.f32.gmra.mrb[0].mxu0 %v77
    %v179 = vpop.f32.mrb[0].mxu0
    %v180 = vadd.f32 %v108, %v179
    %v181 = vpop.f32.mrb[0].mxu0
    %182 = vdwg.mxu0
    %v183 = vmax.f32 %v180, 0.0
    %v184 = vld [vmem:[%s5] sm:$0x1]
    %v186 = vlaneseq
    %v187 = vshrl.u32 %v186, 7
    %v188 = vsub.s32 0, %v187
    %v189 = vrot.slane %v184, %v188
    %v191 = vmul.f32 %v183, %v189
    %192 = vadd.xlane.f32.xlu0 %v191
    %v193 = vpop.xlane.xlu0 %192
    %s194 = sld [smem:[#allocation2]]
    %v195 = vstv %s194
    %v196 = vadd.f32 %v193, %v195
    %v198 = vlaneseq
    %v199 = vand.u32 %v198, 127
    %v200 = vlaneseq
    %v201 = vshrl.u32 %v200, 7
    %v202 = vsub.s32 %v199, %v201
    %v203 = vrot.slane %v196, %v202
    %vm205 = vcmask 57344
    %206 = vst.msk [vmem:[#allocation9] sm:$0x1] %vm205, %v203
    // Predicated region
    $region42: #{scoring_forward.1} parent=1 // pred_check
      _
    $region43: #{scoring_forward.1} parent=1 // pred_check_branch
      %208 = sbr.rel (0) target = $region45
    $region44: #{scoring_forward.1} parent=1 // pred_region
      %s210 = ssub.s32 16, 16
      %211 = vsyncadd [#allocation5], %s210
      %s213 = sshll.u32 [#allocation9], 4
      %s214 = int_to_ptr.vmem [resolvable:$true] %s213
      %216 = dma.vmem_to_hbm [thread:$0]  %s214, 16, %s7, [#allocation5]
    $region45: #{scoring_forward.1} parent=1 // pred_fallthru
      _
    // Predicated region
    $region46: #{scoring_forward.1} parent=1 // pred_check
      _
    $region47: #{scoring_forward.1} parent=1 // pred_check_branch
      %218 = sbr.rel (0) target = $region49
    $region48: #{scoring_forward.1} parent=1 // pred_region
      %219 = dma.done [#allocation5], 16
    $region49: #{scoring_forward.1} parent=1 // pred_fallthru
      _
    %220 = vsyncpa [#allocation4], 1
    %221 = vsyncpa [#allocation7], 1
    %222 = vsyncpa [#allocation5], 1

</llo_original>
